<compile_context>
chip_gen: v7x
topology: tpu7x:2x2x1
jax: 0.10.0
libtpu: 0.0.40
codegen_flags: <defaults>
</compile_context>

<pallas_src>
import functools

import jax
import jax.numpy as jnp
from jax.experimental import pallas as pl
from jax.experimental.pallas import tpu as pltpu


def _round_up(x, m):
    return ((x + m - 1) // m) * m


def rnn_kernel(obs_ref, h0_ref, w1_ref, b1_ref, wg_ref, bg_ref, w2_ref, b2_ref,
               *rest, rnn_dim, no_rnn):
    # rest = (wnr_ref, bnr_ref, q_ref, h_out_ref, h_scr) when no_rnn
    #      = (q_ref, h_out_ref, h_scr)                   otherwise
    if no_rnn:
        wnr_ref, bnr_ref, q_ref, h_out_ref, h_scr = rest
    else:
        q_ref, h_out_ref, h_scr = rest

    rd = rnn_dim
    t = pl.program_id(1)

    # New batch tile: seed the VMEM-resident hidden state from the h0 input block.
    @pl.when(t == 0)
    def _():
        h_scr[...] = h0_ref[...]

    # fc1 + ReLU
    x = jnp.dot(obs_ref[...], w1_ref[...], preferred_element_type=jnp.float32)
    x = jnp.maximum(x + b1_ref[...], 0.0)

    h_in = h_scr[...]

    # Single fused GRU gate matmul on xh = [x | h]:
    #   g = [ x@W_ir + h@W_hr + b_ir + b_hr | x@W_iz + h@W_hz + b_iz + b_hz |
    #         x@W_in + b_in                 | h@W_hn + b_hn                 | zero pad ]
    xh = jnp.concatenate([x, h_in], axis=-1)
    g = jnp.dot(xh, wg_ref[...], preferred_element_type=jnp.float32) + bg_ref[...]

    # Only lanes 0:2*rd of the sigmoid are read; the n/pad lanes and the zero-padded batch
    # rows are computed but discarded (cheap VPU/EUP filler) -- do not start reading them.
    rz = jax.nn.sigmoid(g[:, : 2 * rd])
    r = rz[:, :rd]
    z = rz[:, rd:2 * rd]
    n = jnp.tanh(g[:, 2 * rd:3 * rd] + r * g[:, 3 * rd:4 * rd])

    # h' = (1 - z) * n + z * h  ==  n + z * (h - n)
    h_new = n + z * (h_in - n)
    h_scr[...] = h_new
    # Output block index is constant over t, so only the final hidden state lands in HBM.
    h_out_ref[...] = h_new

    if no_rnn:
        u = jnp.dot(x, wnr_ref[...], preferred_element_type=jnp.float32)
        u = jnp.maximum(u + bnr_ref[...], 0.0)
        q = jnp.dot(u, w2_ref[...], preferred_element_type=jnp.float32) + b2_ref[...]
    else:
        q = jnp.dot(h_new, w2_ref[...], preferred_element_type=jnp.float32) + b2_ref[...]

    # q_ref is either lane-dense (tb, 128) or logical (tb, n_actions); slicing to the ref
    # width is a no-op in the lane-dense case.
    q_ref[...] = q[:, : q_ref.shape[-1]]


def rnn_forward_rollout(obs_seq, hidden_state, kp, n_actions, *, no_rnn=False,
                        max_block_b=1024, lane_dense_q=None):
    """T-step rollout in a single pallas_call.

    obs_seq: (T, B, input_dim); hidden_state: anything reshapeable to (B, rnn_dim).
    Returns (q: (T, B, n_actions), h_T: (B, rnn_dim)) -- identical to applying the
    PyTorch forward() T times while threading the hidden state.
    """
    obs_seq = obs_seq.astype(jnp.float32)
    T, b, din = obs_seq.shape
    rnn_dim = kp["w1"].shape[1]
    gpad = kp["wg"].shape[1]
    qpad = kp["w2"].shape[1]

    h0 = hidden_state.reshape(-1, rnn_dim).astype(jnp.float32)

    # Batch tiling: rows are a multiple of 8 sublanes, and we aim for >= 2 tiles whenever
    # b >= 16 so the "parallel" batch axis can be split across v7x's two TensorCores.
    tb = min(_round_up(max(pl.cdiv(b, 2), 1), 8), max_block_b)
    b_pad = _round_up(b, tb)
    if b_pad != b:
        obs_seq = jnp.pad(obs_seq, ((0, 0), (0, b_pad - b), (0, 0)))
        h0 = jnp.pad(h0, ((0, b_pad - b), (0, 0)))
    nb = b_pad // tb

    # q writeback width: lane-dense 128-pad only pays off for tiny (acting) batches; at
    # training batch sizes the padded lanes dominate per-row HBM traffic, so store at the
    # logical width (masked vst) instead.
    if lane_dense_q is None:
        lane_dense_q = b_pad <= 64
    qw = qpad if lane_dense_q else n_actions

    def row2_spec(d):    # (b_pad, d) operands, batch-tiled (h0 / h_out)
        return pl.BlockSpec((tb, d), lambda bi, ti: (bi, 0))

    def seq_spec(d):     # (T, b_pad, d) operands, time-stepped (obs / q)
        return pl.BlockSpec((None, tb, d), lambda bi, ti: (ti, bi, 0))

    def rep_spec(shape):  # weights/biases: same block every step -> stay VMEM-resident
        return pl.BlockSpec(shape, lambda bi, ti: (0, 0))

    in_arrays = [obs_seq, h0, kp["w1"], kp["b1"], kp["wg"], kp["bg"], kp["w2"], kp["b2"]]
    in_specs = [seq_spec(din), row2_spec(rnn_dim),
                rep_spec(kp["w1"].shape), rep_spec(kp["b1"].shape),
                rep_spec(kp["wg"].shape), rep_spec(kp["bg"].shape),
                rep_spec(kp["w2"].shape), rep_spec(kp["b2"].shape)]
    if no_rnn:
        in_arrays += [kp["wnr"], kp["bnr"]]
        in_specs += [rep_spec(kp["wnr"].shape), rep_spec(kp["bnr"].shape)]

    # Explicit VMEM budget (mainly for v5e's 16 MiB scoped default if tb is pushed up);
    # even tb=2048 with a 128-lane q is only a few MiB, so 32..64 MiB is ample headroom.
    weight_bytes = 4 * sum(int(v.size) for v in kp.values())
    tile_bytes = 4 * tb * (2 * (din + qw) + 3 * rnn_dim)
    vmem_limit = int(min(max(2 * (tile_bytes + weight_bytes) + (4 << 20), 32 << 20), 64 << 20))

    flops = 2 * T * b_pad * (din * rnn_dim + 2 * rnn_dim * gpad + rnn_dim * qpad
                             + (rnn_dim * rnn_dim if no_rnn else 0))
    transcendentals = 3 * T * b_pad * rnn_dim
    bytes_accessed = 4 * (T * b_pad * (din + qw) + 2 * b_pad * rnn_dim) + weight_bytes

    kernel = functools.partial(rnn_kernel, rnn_dim=rnn_dim, no_rnn=no_rnn)

    q_seq, h_out = pl.pallas_call(
        kernel,
        grid=(nb, T),
        in_specs=in_specs,
        out_specs=(seq_spec(qw), row2_spec(rnn_dim)),
        out_shape=(jax.ShapeDtypeStruct((T, b_pad, qw), jnp.float32),
                   jax.ShapeDtypeStruct((b_pad, rnn_dim), jnp.float32)),
        scratch_shapes=[pltpu.VMEM((tb, rnn_dim), jnp.float32)],
        compiler_params=pltpu.CompilerParams(
            dimension_semantics=("parallel", "arbitrary"),
            vmem_limit_bytes=vmem_limit),
        cost_estimate=pl.CostEstimate(flops=flops,
                                      transcendentals=transcendentals,
                                      bytes_accessed=bytes_accessed),
    )(*in_arrays)

    return q_seq[:, :b, :n_actions], h_out[:b, :]


def rnn_forward(obs, hidden_state, kp, n_actions, *, no_rnn=False,
                max_block_b=1024, lane_dense_q=None):
    """Single-step forward matching RNN.forward(obs, hidden_state) -> (q, h). For acting."""
    q_seq, h = rnn_forward_rollout(obs[None], hidden_state, kp, n_actions,
                                   no_rnn=no_rnn, max_block_b=max_block_b,
                                   lane_dense_q=lane_dense_q)
    return q_seq[0], h


def init_params(key, input_shape, rnn_dim, n_actions):
    """Raw PyTorch-style params (weights stored transposed: (in, out)); U(-1/sqrt(fan_in), +)."""
    keys = jax.random.split(key, 12)

    def u(k, shape, fan_in):
        bound = 1.0 / jnp.sqrt(jnp.float32(fan_in))
        return jax.random.uniform(k, shape, jnp.float32, -bound, bound)

    return {
        # fc1: Linear(input_shape, rnn_dim)
        "w1": u(keys[0], (input_shape, rnn_dim), input_shape),
        "b1": u(keys[1], (1, rnn_dim), input_shape),
        # GRUCell(rnn_dim, rnn_dim): stacked (r, z, n) gates, each (in, out)
        "wih": u(keys[2], (3, rnn_dim, rnn_dim), rnn_dim),
        "bih": u(keys[3], (3, 1, rnn_dim), rnn_dim),
        "whh": u(keys[4], (3, rnn_dim, rnn_dim), rnn_dim),
        "bhh": u(keys[5], (3, 1, rnn_dim), rnn_dim),
        # fc2: Linear(rnn_dim, n_actions)
        "w2": u(keys[6], (rnn_dim, n_actions), rnn_dim),
        "b2": u(keys[7], (1, n_actions), rnn_dim),
        # no_rnn_fc: Linear(rnn_dim, rnn_dim)
        "wnr": u(keys[8], (rnn_dim, rnn_dim), rnn_dim),
        "bnr": u(keys[9], (1, rnn_dim), rnn_dim),
    }


def pack_params(p):
    """Repack raw params into the fused, lane-padded kernel layout.

    wg: (2*rnn_dim, gpad) acting on xh = [x | h], columns [r | z | gi_n | gh_n | pad].
    bg: (1, gpad) fused bias [b_ir+b_hr | b_iz+b_hz | b_in | b_hn | 0] (b_hn sits in the
        gh_n column so the kernel still scales it by r).
    """
    rnn_dim = p["w1"].shape[1]
    n_actions = p["w2"].shape[1]
    gpad = _round_up(4 * rnn_dim, 128)   # fused gate width, lane-dense
    qpad = _round_up(n_actions, 128)     # lane-dense q width (used for tiny batches)

    def pad_cols(a, width):
        return jnp.pad(a, ((0, 0), (0, width - a.shape[1])))

    zeros = jnp.zeros((rnn_dim, rnn_dim), jnp.float32)
    top = jnp.concatenate([p["wih"][0], p["wih"][1], p["wih"][2], zeros], axis=1)   # x rows
    bot = jnp.concatenate([p["whh"][0], p["whh"][1], zeros, p["whh"][2]], axis=1)   # h rows
    wg = pad_cols(jnp.concatenate([top, bot], axis=0), gpad)                        # (2rd, gpad)
    bg = pad_cols(jnp.concatenate([p["bih"][0] + p["bhh"][0],
                                   p["bih"][1] + p["bhh"][1],
                                   p["bih"][2],
                                   p["bhh"][2]], axis=1), gpad)                     # (1, gpad)

    return {
        "w1": p["w1"], "b1": p["b1"],
        "wg": wg, "bg": bg,
        "w2": pad_cols(p["w2"], qpad), "b2": pad_cols(p["b2"], qpad),
        "wnr": p["wnr"], "bnr": p["bnr"],
    }


def rnn_forward_ref(obs, hidden_state, p, *, no_rnn=False):
    """Pure-JAX single-step reference (PyTorch GRUCell semantics)."""
    rnn_dim = p["w1"].shape[1]
    x = jax.nn.relu(obs @ p["w1"] + p["b1"])
    h_in = hidden_state.reshape(-1, rnn_dim)
    r = jax.nn.sigmoid(x @ p["wih"][0] + p["bih"][0] + h_in @ p["whh"][0] + p["bhh"][0])
    z = jax.nn.sigmoid(x @ p["wih"][1] + p["bih"][1] + h_in @ p["whh"][1] + p["bhh"][1])
    n = jnp.tanh(x @ p["wih"][2] + p["bih"][2] + r * (h_in @ p["whh"][2] + p["bhh"][2]))
    h = (1.0 - z) * n + z * h_in
    if no_rnn:
        u = jax.nn.relu(x @ p["wnr"] + p["bnr"])
        q = u @ p["w2"] + p["b2"]
    else:
        q = h @ p["w2"] + p["b2"]
    return q, h


if __name__ == "__main__":
    B = 8            # batch (n_agents * n_envs flattened)
    INPUT_SHAPE = 16
    RNN_DIM = 32     # args.rnn_hidden_dim
    N_ACTIONS = 6    # args.n_actions
    T = 6            # rollout length for the fused multi-step variant

    key = jax.random.PRNGKey(0)
    k_obs, k_h, k_params, k_seq = jax.random.split(key, 4)

    obs = jax.random.normal(k_obs, (B, INPUT_SHAPE), jnp.float32)
    hidden_state = jax.random.normal(k_h, (B, RNN_DIM), jnp.float32)
    params = init_params(k_params, INPUT_SHAPE, RNN_DIM, N_ACTIONS)
    packed = pack_params(params)

    # --- single-step (== PyTorch forward), no_rnn = False ---
    q, h = rnn_forward(obs, hidden_state, packed, N_ACTIONS, no_rnn=False)
    jax.block_until_ready((q, h))
    q_ref, h_ref = rnn_forward_ref(obs, hidden_state, params, no_rnn=False)
    assert q.shape == (B, N_ACTIONS) and h.shape == (B, RNN_DIM)
    assert jnp.allclose(q, q_ref, atol=1e-5, rtol=1e-5)
    assert jnp.allclose(h, h_ref, atol=1e-5, rtol=1e-5)

    # --- single-step, no_rnn = True (extra fc path / conditional args) ---
    q2, h2 = rnn_forward(obs, hidden_state, packed, N_ACTIONS, no_rnn=True)
    jax.block_until_ready((q2, h2))
    q2_ref, h2_ref = rnn_forward_ref(obs, hidden_state, params, no_rnn=True)
    assert jnp.allclose(q2, q2_ref, atol=1e-5, rtol=1e-5)
    assert jnp.allclose(h2, h2_ref, atol=1e-5, rtol=1e-5)

    # --- single-step with the non-padded (masked-vst) q path ---
    q3, h3 = rnn_forward(obs, hidden_state, packed, N_ACTIONS, no_rnn=False, lane_dense_q=False)
    jax.block_until_ready((q3, h3))
    assert jnp.allclose(q3, q_ref, atol=1e-5, rtol=1e-5)
    assert jnp.allclose(h3, h_ref, atol=1e-5, rtol=1e-5)

    # --- fused T-step rollout: one kernel, h carried in VMEM scratch ---
    obs_seq = jax.random.normal(k_seq, (T, B, INPUT_SHAPE), jnp.float32)
    q_seq, h_T = rnn_forward_rollout(obs_seq, hidden_state, packed, N_ACTIONS, no_rnn=False)
    jax.block_until_ready((q_seq, h_T))
    h_cur = hidden_state
    for t in range(T):
        q_t_ref, h_cur = rnn_forward_ref(obs_seq[t], h_cur, params, no_rnn=False)
        assert jnp.allclose(q_seq[t], q_t_ref, atol=1e-5, rtol=1e-5)
    assert jnp.allclose(h_T, h_cur, atol=1e-5, rtol=1e-5)

    print("KERNEL_OK")
</pallas_src>

<mosaic_0001>
module attributes {stable_mosaic.version = 11 : i64} {
  func.func @rnn_kernel(%arg0: i32, %arg1: i32, %arg2: memref<1x8x16xf32, #tpu.memory_space<vmem>>, %arg3: memref<8x32xf32, #tpu.memory_space<vmem>>, %arg4: memref<16x32xf32, #tpu.memory_space<vmem>>, %arg5: memref<1x32xf32, #tpu.memory_space<vmem>>, %arg6: memref<64x128xf32, #tpu.memory_space<vmem>>, %arg7: memref<1x128xf32, #tpu.memory_space<vmem>>, %arg8: memref<32x128xf32, #tpu.memory_space<vmem>>, %arg9: memref<1x128xf32, #tpu.memory_space<vmem>>, %arg10: memref<1x8x128xf32, #tpu.memory_space<vmem>>, %arg11: memref<8x32xf32, #tpu.memory_space<vmem>>, %arg12: memref<8x32xf32, #tpu.memory_space<vmem>>) attributes {dimension_semantics = [#tpu.dimension_semantics<parallel>, #tpu.dimension_semantics<arbitrary>], iteration_bounds = array<i64: 1, 1>, scalar_prefetch = 0 : i64, scratch_operands = 1 : i64, tpu.core_type = #tpu.core_type<tc>, window_params = [{transform_indices = @transform_0, window_bounds = array<i64: 1, 8, 16>}, {transform_indices = @transform_1, window_bounds = array<i64: 8, 32>}, {pipeline_mode = #tpu.pipeline_mode<synchronous>, transform_indices = @transform_2, window_bounds = array<i64: 16, 32>}, {pipeline_mode = #tpu.pipeline_mode<synchronous>, transform_indices = @transform_3, window_bounds = array<i64: 1, 32>}, {pipeline_mode = #tpu.pipeline_mode<synchronous>, transform_indices = @transform_4, window_bounds = array<i64: 64, 128>}, {pipeline_mode = #tpu.pipeline_mode<synchronous>, transform_indices = @transform_5, window_bounds = array<i64: 1, 128>}, {pipeline_mode = #tpu.pipeline_mode<synchronous>, transform_indices = @transform_6, window_bounds = array<i64: 32, 128>}, {pipeline_mode = #tpu.pipeline_mode<synchronous>, transform_indices = @transform_7, window_bounds = array<i64: 1, 128>}, {transform_indices = @transform_8, window_bounds = array<i64: 1, 8, 128>}, {transform_indices = @transform_9, window_bounds = array<i64: 8, 32>}]} {
    %c0_i32 = arith.constant 0 : i32
    %0 = arith.cmpi eq, %arg1, %c0_i32 : i32
    %1 = arith.extui %0 : i1 to i32
    %c0_i32_0 = arith.constant 0 : i32
    %2 = arith.cmpi ne, %1, %c0_i32_0 : i32
    scf.if %2 {
      %c0_28 = arith.constant 0 : index
      %c0_29 = arith.constant 0 : index
      %45 = vector.load %arg3[%c0_28, %c0_29] : memref<8x32xf32, #tpu.memory_space<vmem>>, vector<8x32xf32>
      %c0_30 = arith.constant 0 : index
      %c0_31 = arith.constant 0 : index
      %46 = vector.load %arg12[%c0_30, %c0_31] : memref<8x32xf32, #tpu.memory_space<vmem>>, vector<8x32xf32>
      tpu.vector_store %arg12[%c0_30, %c0_31], %45 {strides = array<i32>} : memref<8x32xf32, #tpu.memory_space<vmem>>, vector<8x32xf32>,
    } else {
    }
    %c0 = arith.constant 0 : index
    %c0_1 = arith.constant 0 : index
    %c0_2 = arith.constant 0 : index
    %3 = vector.load %arg2[%c0, %c0_1, %c0_2] : memref<1x8x16xf32, #tpu.memory_space<vmem>>, vector<1x8x16xf32>
    %4 = vector.shape_cast %3 : vector<1x8x16xf32> to vector<8x16xf32>
    %c0_3 = arith.constant 0 : index
    %c0_4 = arith.constant 0 : index
    %5 = vector.load %arg4[%c0_3, %c0_4] : memref<16x32xf32, #tpu.memory_space<vmem>>, vector<16x32xf32>
    %cst = arith.constant dense<0.000000e+00> : vector<8x32xf32>
    %6 = tpu.matmul %4, %5, %cst {dimension_numbers = #tpu.dot_dimension_numbers<[1], [0], [0], [1], [0, 0, 1, 1], [], []>} : vector<8x16xf32>, vector<16x32xf32>, vector<8x32xf32> -> vector<8x32xf32>
    %c0_5 = arith.constant 0 : index
    %c0_6 = arith.constant 0 : index
    %7 = vector.load %arg5[%c0_5, %c0_6] : memref<1x32xf32, #tpu.memory_space<vmem>>, vector<1x32xf32>
    %8 = vector.broadcast %7 : vector<1x32xf32> to vector<8x32xf32>
    %9 = arith.addf %6, %8 : vector<8x32xf32>
    %cst_7 = arith.constant 0.000000e+00 : f32
    %10 = vector.broadcast %cst_7 : f32 to vector<8x32xf32>
    %11 = arith.maximumf %9, %10 : vector<8x32xf32>
    %c0_8 = arith.constant 0 : index
    %c0_9 = arith.constant 0 : index
    %12 = vector.load %arg12[%c0_8, %c0_9] : memref<8x32xf32, #tpu.memory_space<vmem>>, vector<8x32xf32>
    %13 = tpu.concatenate %11, %12 in 1 : vector<8x32xf32>, vector<8x32xf32> -> vector<8x64xf32>
    %c0_10 = arith.constant 0 : index
    %c0_11 = arith.constant 0 : index
    %14 = vector.load %arg6[%c0_10, %c0_11] : memref<64x128xf32, #tpu.memory_space<vmem>>, vector<64x128xf32>
    %cst_12 = arith.constant dense<0.000000e+00> : vector<8x128xf32>
    %15 = tpu.matmul %13, %14, %cst_12 {dimension_numbers = #tpu.dot_dimension_numbers<[1], [0], [0], [1], [0, 0, 1, 1], [], []>} : vector<8x64xf32>, vector<64x128xf32>, vector<8x128xf32> -> vector<8x128xf32>
    %c0_13 = arith.constant 0 : index
    %c0_14 = arith.constant 0 : index
    %16 = vector.load %arg7[%c0_13, %c0_14] : memref<1x128xf32, #tpu.memory_space<vmem>>, vector<1x128xf32>
    %17 = vector.broadcast %16 : vector<1x128xf32> to vector<8x128xf32>
    %18 = arith.addf %15, %17 : vector<8x128xf32>
    %19 = vector.extract_strided_slice %18 {offsets = [0, 0], sizes = [8, 64], strides = [1, 1]} : vector<8x128xf32> to vector<8x64xf32>
    %20 = arith.negf %19 : vector<8x64xf32>
    %21 = math.exp %20 : vector<8x64xf32>
    %cst_15 = arith.constant 1.000000e+00 : f32
    %22 = vector.broadcast %cst_15 : f32 to vector<8x64xf32>
    %23 = arith.addf %22, %21 : vector<8x64xf32>
    %24 = arith.divf %22, %23 : vector<8x64xf32>
    %25 = vector.extract_strided_slice %24 {offsets = [0, 0], sizes = [8, 32], strides = [1, 1]} : vector<8x64xf32> to vector<8x32xf32>
    %26 = vector.extract_strided_slice %24 {offsets = [0, 32], sizes = [8, 32], strides = [1, 1]} : vector<8x64xf32> to vector<8x32xf32>
    %27 = vector.extract_strided_slice %18 {offsets = [0, 64], sizes = [8, 32], strides = [1, 1]} : vector<8x128xf32> to vector<8x32xf32>
    %28 = vector.extract_strided_slice %18 {offsets = [0, 96], sizes = [8, 32], strides = [1, 1]} : vector<8x128xf32> to vector<8x32xf32>
    %29 = arith.mulf %25, %28 : vector<8x32xf32>
    %30 = arith.addf %27, %29 : vector<8x32xf32>
    %31 = math.tanh %30 : vector<8x32xf32>
    %32 = arith.subf %12, %31 : vector<8x32xf32>
    %33 = arith.mulf %26, %32 : vector<8x32xf32>
    %34 = arith.addf %31, %33 : vector<8x32xf32>
    %c0_16 = arith.constant 0 : index
    %c0_17 = arith.constant 0 : index
    %35 = vector.load %arg12[%c0_16, %c0_17] : memref<8x32xf32, #tpu.memory_space<vmem>>, vector<8x32xf32>
    tpu.vector_store %arg12[%c0_16, %c0_17], %34 {strides = array<i32>} : memref<8x32xf32, #tpu.memory_space<vmem>>, vector<8x32xf32>,
    %c0_18 = arith.constant 0 : index
    %c0_19 = arith.constant 0 : index
    %36 = vector.load %arg11[%c0_18, %c0_19] : memref<8x32xf32, #tpu.memory_space<vmem>>, vector<8x32xf32>
    tpu.vector_store %arg11[%c0_18, %c0_19], %34 {strides = array<i32>} : memref<8x32xf32, #tpu.memory_space<vmem>>, vector<8x32xf32>,
    %c0_20 = arith.constant 0 : index
    %c0_21 = arith.constant 0 : index
    %37 = vector.load %arg8[%c0_20, %c0_21] : memref<32x128xf32, #tpu.memory_space<vmem>>, vector<32x128xf32>
    %cst_22 = arith.constant dense<0.000000e+00> : vector<8x128xf32>
    %38 = tpu.matmul %34, %37, %cst_22 {dimension_numbers = #tpu.dot_dimension_numbers<[1], [0], [0], [1], [0, 0, 1, 1], [], []>} : vector<8x32xf32>, vector<32x128xf32>, vector<8x128xf32> -> vector<8x128xf32>
    %c0_23 = arith.constant 0 : index
    %c0_24 = arith.constant 0 : index
    %39 = vector.load %arg9[%c0_23, %c0_24] : memref<1x128xf32, #tpu.memory_space<vmem>>, vector<1x128xf32>
    %40 = vector.broadcast %39 : vector<1x128xf32> to vector<8x128xf32>
    %41 = arith.addf %38, %40 : vector<8x128xf32>
    %c0_25 = arith.constant 0 : index
    %c0_26 = arith.constant 0 : index
    %c0_27 = arith.constant 0 : index
    %42 = vector.load %arg10[%c0_25, %c0_26, %c0_27] : memref<1x8x128xf32, #tpu.memory_space<vmem>>, vector<1x8x128xf32>
    %43 = vector.shape_cast %42 : vector<1x8x128xf32> to vector<8x128xf32>
    %44 = vector.shape_cast %41 : vector<8x128xf32> to vector<1x8x128xf32>
    tpu.vector_store %arg10[%c0_25, %c0_26, %c0_27], %44 {strides = array<i32>} : memref<1x8x128xf32, #tpu.memory_space<vmem>>, vector<1x8x128xf32>,
    return
  }
  func.func @transform_0(%arg0: i32, %arg1: i32) -> (i32, i32, i32) {
    %c0_i32 = arith.constant 0 : i32
    %c0_i32_0 = arith.constant 0 : i32
    return %arg1, %arg0, %c0_i32 : i32, i32, i32
  }
  func.func @transform_1(%arg0: i32, %arg1: i32) -> (i32, i32) {
    %c0_i32 = arith.constant 0 : i32
    %c0_i32_0 = arith.constant 0 : i32
    return %arg0, %c0_i32 : i32, i32
  }
  func.func @transform_2(%arg0: i32, %arg1: i32) -> (i32, i32) {
    %c0_i32 = arith.constant 0 : i32
    %c0_i32_0 = arith.constant 0 : i32
    %c0_i32_1 = arith.constant 0 : i32
    return %c0_i32, %c0_i32_0 : i32, i32
  }
  func.func @transform_3(%arg0: i32, %arg1: i32) -> (i32, i32) {
    %c0_i32 = arith.constant 0 : i32
    %c0_i32_0 = arith.constant 0 : i32
    %c0_i32_1 = arith.constant 0 : i32
    return %c0_i32, %c0_i32_0 : i32, i32
  }
  func.func @transform_4(%arg0: i32, %arg1: i32) -> (i32, i32) {
    %c0_i32 = arith.constant 0 : i32
    %c0_i32_0 = arith.constant 0 : i32
    %c0_i32_1 = arith.constant 0 : i32
    return %c0_i32, %c0_i32_0 : i32, i32
  }
  func.func @transform_5(%arg0: i32, %arg1: i32) -> (i32, i32) {
    %c0_i32 = arith.constant 0 : i32
    %c0_i32_0 = arith.constant 0 : i32
    %c0_i32_1 = arith.constant 0 : i32
    return %c0_i32, %c0_i32_0 : i32, i32
  }
  func.func @transform_6(%arg0: i32, %arg1: i32) -> (i32, i32) {
    %c0_i32 = arith.constant 0 : i32
    %c0_i32_0 = arith.constant 0 : i32
    %c0_i32_1 = arith.constant 0 : i32
    return %c0_i32, %c0_i32_0 : i32, i32
  }
  func.func @transform_7(%arg0: i32, %arg1: i32) -> (i32, i32) {
    %c0_i32 = arith.constant 0 : i32
    %c0_i32_0 = arith.constant 0 : i32
    %c0_i32_1 = arith.constant 0 : i32
    return %c0_i32, %c0_i32_0 : i32, i32
  }
  func.func @transform_8(%arg0: i32, %arg1: i32) -> (i32, i32, i32) {
    %c0_i32 = arith.constant 0 : i32
    %c0_i32_0 = arith.constant 0 : i32
    return %arg1, %arg0, %c0_i32 : i32, i32, i32
  }
  func.func @transform_9(%arg0: i32, %arg1: i32) -> (i32, i32) {
    %c0_i32 = arith.constant 0 : i32
    %c0_i32_0 = arith.constant 0 : i32
    return %arg0, %c0_i32 : i32, i32
  }
}

</mosaic_0001>

<llo_original>
// kernel: tpu_custom_call.1
$region0: #{tpu_custom_call.1}
  #allocation0 [shape = 'u32[]', space=smem, size = 0x4, offset = 0x4, fixed_abs, tag = 'smem constant byte address 0x4 - core index']
  #allocation1 [shape = 'u32[144,128]{1,0:T(1,128)}', space=vmem, size = 0x12000, scoped, tag = 'internal scratch']
  #allocation2 [shape = 'f32[8,32]{1,0:T(8,128)}', space=vmem, size = 0x1000, scoped, tag = 'scratch operand']
  %s0 = inlined_call_operand.hbm [shape: f32[1,8,16], index: 0, kind: input, shape index: {}]
  %s1 = inlined_call_operand.hbm [shape: f32[8,32], index: 1, kind: input, shape index: {}]
  %s2 = inlined_call_operand.hbm [shape: f32[16,32], index: 2, kind: input, shape index: {}]
  %s3 = inlined_call_operand.vmem [shape: f32[1,32], index: 3, kind: input, shape index: {}]
  %s4 = inlined_call_operand.hbm [shape: f32[64,128], index: 4, kind: input, shape index: {}]
  %s5 = inlined_call_operand.vmem [shape: f32[1,128], index: 5, kind: input, shape index: {}]
  %s6 = inlined_call_operand.hbm [shape: f32[32,128], index: 6, kind: input, shape index: {}]
  %s7 = inlined_call_operand.vmem [shape: f32[1,128], index: 7, kind: input, shape index: {}]
  %s8 = inlined_call_operand.hbm [shape: f32[1,8,128], index: 8, kind: output, shape index: {0}]
  %s9 = inlined_call_operand.hbm [shape: f32[8,32], index: 9, kind: output, shape index: {1}]
  %10 = xla_tuple %s8, %s9
  %s11 = sld [smem:[#allocation0]]
  $region74: #{tpu_custom_call.1} parent=0
    _
  %s13 = ssub.s32 1, %s11
  %s14 = scalar_select 0, %s13, %s11
  $region1: #{tpu_custom_call.1} parent=0
    #allocation3 [shape = 'u8[4096]{0}', space=vmem, size = 0x1000, scoped, tag = 'input window, operand 0, single buffered']
    #allocation4 [shape = 's32[1]{0}', space=sflag, size = 0x4, scoped, tag = 'scoped memory for tpu_custom_call.1']
    #allocation5 [shape = 's32[1]{0}', space=sflag, size = 0x4, scoped, tag = 'scoped memory for tpu_custom_call.1']
    #allocation6 [shape = 'u8[4096]{0}', space=vmem, size = 0x1000, scoped, tag = 'input window, operand 1, single buffered']
    #allocation7 [shape = 's32[1]{0}', space=sflag, size = 0x4, scoped, tag = 'scoped memory for tpu_custom_call.1']
    #allocation8 [shape = 'u8[8192]{0}', space=vmem, size = 0x2000, scoped, tag = 'input window, operand 2, single buffered']
    #allocation9 [shape = 'u8[32768]{0}', space=vmem, size = 0x8000, scoped, tag = 'input window, operand 4, single buffered']
    #allocation10 [shape = 's32[1]{0}', space=sflag, size = 0x4, scoped, tag = 'scoped memory for tpu_custom_call.1']
    #allocation11 [shape = 'u8[16384]{0}', space=vmem, size = 0x4000, scoped, tag = 'input window, operand 6, single buffered']
    #allocation12 [shape = 'u8[4096]{0}', space=vmem, size = 0x1000, scoped, tag = 'output window, operand 0, single buffered']
    #allocation13 [shape = 'u8[4096]{0}', space=vmem, size = 0x1000, scoped, tag = 'output window, operand 1, single buffered']
    #allocation14 [shape = 's32[1]{0}', space=sflag, size = 0x4, scoped, tag = 'scoped memory for tpu_custom_call.1']
    %15 = vsyncpa [#allocation4], 0
    %16 = vsyncpa [#allocation7], 0
    %17 = vsyncpa [#allocation10], 0
    %18 = vsyncpa [#allocation5], 0
    %19 = vsyncpa [#allocation14], 0
    // Predicated region
    $region2: #{tpu_custom_call.1} parent=1 // pred_check
      _
    $region3: #{tpu_custom_call.1} parent=1 // pred_check_branch
      %21 = sbr.rel (0) target = $region5
    $region4: #{tpu_custom_call.1} parent=1 // pred_region
      %s23 = ssub.s32 128, 128
      %24 = vsyncadd [#allocation4], %s23
      %s26 = sshll.u32 [#allocation3], 4
      %s27 = int_to_ptr.vmem [resolvable:$true] %s26
      %29 = dma.hbm_to_vmem [thread:$0]  %s0, 128, %s27, [#allocation4]
    $region5: #{tpu_custom_call.1} parent=1 // pred_fallthru
      _
    // Predicated region
    $region6: #{tpu_custom_call.1} parent=1 // pred_check
      _
    $region7: #{tpu_custom_call.1} parent=1 // pred_check_branch
      %31 = sbr.rel (0) target = $region9
    $region8: #{tpu_custom_call.1} parent=1 // pred_region
      %s33 = ssub.s32 128, 128
      %34 = vsyncadd [#allocation7], %s33
      %s36 = sshll.u32 [#allocation6], 4
      %s37 = int_to_ptr.vmem [resolvable:$true] %s36
      %39 = dma.hbm_to_vmem [thread:$0]  %s1, 128, %s37, [#allocation7]
    $region9: #{tpu_custom_call.1} parent=1 // pred_fallthru
      _
    // Predicated region
    $region10: #{tpu_custom_call.1} parent=1 // pred_check
      _
    $region11: #{tpu_custom_call.1} parent=1 // pred_check_branch
      %41 = sbr.rel (0) target = $region13
    $region12: #{tpu_custom_call.1} parent=1 // pred_region
      %s43 = ssub.s32 256, 256
      %44 = vsyncadd [#allocation7], %s43
      %s45 = sshll.u32 [#allocation8], 4
      %s46 = int_to_ptr.vmem [resolvable:$true] %s45
      %51 = dma.hbm_to_vmem [thread:$0]  %s2, 256, %s46, [#allocation7], 128, 128, 8
    $region13: #{tpu_custom_call.1} parent=1 // pred_fallthru
      _
    // Predicated region
    $region14: #{tpu_custom_call.1} parent=1 // pred_check
      _
    $region15: #{tpu_custom_call.1} parent=1 // pred_check_branch
      %53 = sbr.rel (0) target = $region17
    $region16: #{tpu_custom_call.1} parent=1 // pred_region
      _
    $region17: #{tpu_custom_call.1} parent=1 // pred_fallthru
      _
    // Predicated region
    $region18: #{tpu_custom_call.1} parent=1 // pred_check
      _
    $region19: #{tpu_custom_call.1} parent=1 // pred_check_branch
      %55 = sbr.rel (0) target = $region21
    $region20: #{tpu_custom_call.1} parent=1 // pred_region
      %s57 = ssub.s32 1024, 1024
      %58 = vsyncadd [#allocation10], %s57
      %s59 = sshll.u32 [#allocation9], 4
      %s60 = int_to_ptr.vmem [resolvable:$true] %s59
      %65 = dma.hbm_to_vmem [thread:$0]  %s4, 1024, %s60, [#allocation10], 128, 128, 8
    $region21: #{tpu_custom_call.1} parent=1 // pred_fallthru
      _
    // Predicated region
    $region22: #{tpu_custom_call.1} parent=1 // pred_check
      _
    $region23: #{tpu_custom_call.1} parent=1 // pred_check_branch
      %67 = sbr.rel (0) target = $region25
    $region24: #{tpu_custom_call.1} parent=1 // pred_region
      _
    $region25: #{tpu_custom_call.1} parent=1 // pred_fallthru
      _
    // Predicated region
    $region26: #{tpu_custom_call.1} parent=1 // pred_check
      _
    $region27: #{tpu_custom_call.1} parent=1 // pred_check_branch
      %69 = sbr.rel (0) target = $region29
    $region28: #{tpu_custom_call.1} parent=1 // pred_region
      %s71 = ssub.s32 512, 512
      %72 = vsyncadd [#allocation10], %s71
      %s73 = sshll.u32 [#allocation11], 4
      %s74 = int_to_ptr.vmem [resolvable:$true] %s73
      %79 = dma.hbm_to_vmem [thread:$0]  %s6, 512, %s74, [#allocation10], 128, 128, 8
    $region29: #{tpu_custom_call.1} parent=1 // pred_fallthru
      _
    // Predicated region
    $region30: #{tpu_custom_call.1} parent=1 // pred_check
      _
    $region31: #{tpu_custom_call.1} parent=1 // pred_check_branch
      %81 = sbr.rel (0) target = $region33
    $region32: #{tpu_custom_call.1} parent=1 // pred_region
      _
    $region33: #{tpu_custom_call.1} parent=1 // pred_fallthru
      _
    // Predicated region
    $region34: #{tpu_custom_call.1} parent=1 // pred_check
      _
    $region35: #{tpu_custom_call.1} parent=1 // pred_check_branch
      %83 = sbr.rel (0) target = $region37
    $region36: #{tpu_custom_call.1} parent=1 // pred_region
      %84 = dma.done [#allocation4], 128
    $region37: #{tpu_custom_call.1} parent=1 // pred_fallthru
      _
    // Predicated region
    $region38: #{tpu_custom_call.1} parent=1 // pred_check
      _
    $region39: #{tpu_custom_call.1} parent=1 // pred_check_branch
      %86 = sbr.rel (0) target = $region41
    $region40: #{tpu_custom_call.1} parent=1 // pred_region
      %87 = dma.done [#allocation7], 128
    $region41: #{tpu_custom_call.1} parent=1 // pred_fallthru
      _
    // Predicated region
    $region42: #{tpu_custom_call.1} parent=1 // pred_check
      _
    $region43: #{tpu_custom_call.1} parent=1 // pred_check_branch
      %89 = sbr.rel (0) target = $region45
    $region44: #{tpu_custom_call.1} parent=1 // pred_region
      %90 = dma.done [#allocation7], 256
    $region45: #{tpu_custom_call.1} parent=1 // pred_fallthru
      _
    // Predicated region
    $region46: #{tpu_custom_call.1} parent=1 // pred_check
      _
    $region47: #{tpu_custom_call.1} parent=1 // pred_check_branch
      %92 = sbr.rel (0) target = $region49
    $region48: #{tpu_custom_call.1} parent=1 // pred_region
      %93 = dma.done [#allocation10], 1024
    $region49: #{tpu_custom_call.1} parent=1 // pred_fallthru
      _
    // Predicated region
    $region50: #{tpu_custom_call.1} parent=1 // pred_check
      _
    $region51: #{tpu_custom_call.1} parent=1 // pred_check_branch
      %95 = sbr.rel (0) target = $region53
    $region52: #{tpu_custom_call.1} parent=1 // pred_region
      %96 = dma.done [#allocation10], 512
    $region53: #{tpu_custom_call.1} parent=1 // pred_fallthru
      _
    %p97 = scmp.eq.s32.totalorder 0, 0
    // Predicated region
    $region54: #{tpu_custom_call.1} parent=1 // pred_check
      %p98 = pneg %p97
    $region55: #{tpu_custom_call.1} parent=1 // pred_check_branch
      %100 = sbr.rel (%p98) target = $region57
    $region56: #{tpu_custom_call.1} parent=1 // pred_region
      %v101 = vld [vmem:[#allocation6] sm:$0xff]
      %vm102 = vcmask 261120
      %103 = vst.msk [vmem:[#allocation2] sm:$0xff] %vm102, %v101
    $region57: #{tpu_custom_call.1} parent=1 // pred_fallthru
      _
    %v104 = vld [vmem:[#allocation3] sm:$0xff]
    %v105 = vld [vmem:[#allocation8] sm:$0xff]
    %v106 = vld [vmem:[#allocation8 + $0x8] sm:$0xff]
    %v107 = vld [vmem:[%s3] sm:$0x1]
    %v109 = vlaneseq
    %v110 = vshrl.u32 %v109, 7
    %v111 = vsub.s32 0, %v110
    %v112 = vrot.slane %v107, %v111
    %vm114 = vcmask 130048
    %v116 = vsel %vm114, %v104, 0
    %118 = vmatprep.subr.mxu0 0.0
    %119 = vmatpush1.msra.mxu0 %v105
    %120 = vmatprep.subr.mxu0 0.0
    %121 = vmatpush1.msra.mxu0 %v106
    %122 = vmatprep.subr.mxu0 0.0
    %123 = vmatpush1.msra.mxu0 0.0
    %124 = vmatprep.subr.mxu0 0.0
    %125 = vmatpush1.msra.mxu0 0.0
    %126 = vmatprep.subr.mxu0 0.0
    %127 = vmatpush1.msra.mxu0 0.0
    %128 = vmatprep.subr.mxu0 0.0
    %129 = vmatpush1.msra.mxu0 0.0
    %130 = vmatprep.subr.mxu0 0.0
    %131 = vmatpush1.msra.mxu0 0.0
    %132 = vmatprep.subr.mxu0 0.0
    %133 = vmatpush1.msra.mxu0 0.0
    %134 = vmatprep.subr.mxu0 0.0
    %135 = vmatpush1.msra.mxu0 0.0
    %136 = vmatprep.subr.mxu0 0.0
    %137 = vmatpush1.msra.mxu0 0.0
    %138 = vmatprep.subr.mxu0 0.0
    %139 = vmatpush1.msra.mxu0 0.0
    %140 = vmatprep.subr.mxu0 0.0
    %141 = vmatpush1.msra.mxu0 0.0
    %142 = vmatprep.subr.mxu0 0.0
    %143 = vmatpush1.msra.mxu0 0.0
    %144 = vmatprep.subr.mxu0 0.0
    %145 = vmatpush1.msra.mxu0 0.0
    %146 = vmatprep.subr.mxu0 0.0
    %147 = vmatpush1.msra.mxu0 0.0
    %148 = vmatprep.subr.mxu0 0.0
    %149 = vmatpush1.msra.mxu0 0.0
    %150 = vmatprep.subr.mxu0 0.0
    %151 = vmatpush1.msra.mxu0 0.0
    %152 = vmatprep.subr.mxu0 0.0
    %153 = vmatpush1.msra.mxu0 0.0
    %154 = vmatprep.subr.mxu0 0.0
    %155 = vmatpush1.msra.mxu0 0.0
    %156 = vmatprep.subr.mxu0 0.0
    %157 = vmatpush1.msra.mxu0 0.0
    %158 = vmatprep.subr.mxu0 0.0
    %159 = vmatpush1.msra.mxu0 0.0
    %160 = vmatprep.subr.mxu0 0.0
    %161 = vmatpush1.msra.mxu0 0.0
    %162 = vmatprep.subr.mxu0 0.0
    %163 = vmatpush1.msra.mxu0 0.0
    %164 = vmatprep.subr.mxu0 0.0
    %165 = vmatpush1.msra.mxu0 0.0
    %166 = vmatprep.subr.mxu0 0.0
    %167 = vmatpush1.msra.mxu0 0.0
    %168 = vmatprep.subr.mxu0 0.0
    %169 = vmatpush1.msra.mxu0 0.0
    %170 = vmatprep.subr.mxu0 0.0
    %171 = vmatpush1.msra.mxu0 0.0
    %172 = vmatprep.subr.mxu0 0.0
    %173 = vmatpush1.msra.mxu0 0.0
    %174 = vmatprep.subr.mxu0 0.0
    %175 = vmatpush1.msra.mxu0 0.0
    %176 = vmatprep.subr.mxu0 0.0
    %177 = vmatpush1.msra.mxu0 0.0
    %178 = vmatprep.subr.mxu0 0.0
    %179 = vmatpush1.msra.mxu0 0.0
    %180 = vmatprep.subr.mxu0 0.0
    %181 = vmatpush1.msra.mxu0 0.0
    %182 = vmatprep.mubr.f32.mxu0 0.0
    %183 = vmatmul.mubr.f32.gmra.mrb[0].mxu0 %v116
    %v184 = vpop.f32.mrb[0].mxu0
    %v185 = vadd.f32 %v112, %v184
    %v186 = vpop.f32.mrb[0].mxu0
    %187 = vdwg.mxu0
    %v188 = vmax.f32 %v185, 0.0
    %v189 = vld [vmem:[#allocation2] sm:$0xff]
    %191 = vrot.lane.b32.xlu0 %v189, 32
    %v192 = vpop.permute.xlu0 %191
    %vm194 = vcmask 261120
    %v195 = vsel %vm194, %v188, %v192
    %v196 = vld [vmem:[#allocation9] sm:$0xff]
    %v197 = vld [vmem:[#allocation9 + $0x8] sm:$0xff]
    %v198 = vld [vmem:[#allocation9 + $0x10] sm:$0xff]
    %v199 = vld [vmem:[#allocation9 + $0x18] sm:$0xff]
    %v200 = vld [vmem:[#allocation9 + $0x20] sm:$0xff]
    %v201 = vld [vmem:[#allocation9 + $0x28] sm:$0xff]
    %v202 = vld [vmem:[#allocation9 + $0x30] sm:$0xff]
    %v203 = vld [vmem:[#allocation9 + $0x38] sm:$0xff]
    %v204 = vld [vmem:[%s5] sm:$0x1]
    %v206 = vlaneseq
    %v207 = vshrl.u32 %v206, 7
    %v208 = vsub.s32 0, %v207
    %v209 = vrot.slane %v204, %v208
    %vm211 = vcmask 523264
    %v213 = vsel %vm211, %v195, 0
    %215 = vmatprep.subr.mxu0 0.0
    %216 = vmatpush1.msra.mxu0 %v196
    %217 = vmatprep.subr.mxu0 0.0
    %218 = vmatpush1.msra.mxu0 %v197
    %219 = vmatprep.subr.mxu0 0.0
    %220 = vmatpush1.msra.mxu0 %v198
    %221 = vmatprep.subr.mxu0 0.0
    %222 = vmatpush1.msra.mxu0 %v199
    %223 = vmatprep.subr.mxu0 0.0
    %224 = vmatpush1.msra.mxu0 %v200
    %225 = vmatprep.subr.mxu0 0.0
    %226 = vmatpush1.msra.mxu0 %v201
    %227 = vmatprep.subr.mxu0 0.0
    %228 = vmatpush1.msra.mxu0 %v202
    %229 = vmatprep.subr.mxu0 0.0
    %230 = vmatpush1.msra.mxu0 %v203
    %231 = vmatprep.subr.mxu0 0.0
    %232 = vmatpush1.msra.mxu0 0.0
    %233 = vmatprep.subr.mxu0 0.0
    %234 = vmatpush1.msra.mxu0 0.0
    %235 = vmatprep.subr.mxu0 0.0
    %236 = vmatpush1.msra.mxu0 0.0
    %237 = vmatprep.subr.mxu0 0.0
    %238 = vmatpush1.msra.mxu0 0.0
    %239 = vmatprep.subr.mxu0 0.0
    %240 = vmatpush1.msra.mxu0 0.0
    %241 = vmatprep.subr.mxu0 0.0
    %242 = vmatpush1.msra.mxu0 0.0
    %243 = vmatprep.subr.mxu0 0.0
    %244 = vmatpush1.msra.mxu0 0.0
    %245 = vmatprep.subr.mxu0 0.0
    %246 = vmatpush1.msra.mxu0 0.0
    %247 = vmatprep.subr.mxu0 0.0
    %248 = vmatpush1.msra.mxu0 0.0
    %249 = vmatprep.subr.mxu0 0.0
    %250 = vmatpush1.msra.mxu0 0.0
    %251 = vmatprep.subr.mxu0 0.0
    %252 = vmatpush1.msra.mxu0 0.0
    %253 = vmatprep.subr.mxu0 0.0
    %254 = vmatpush1.msra.mxu0 0.0
    %255 = vmatprep.subr.mxu0 0.0
    %256 = vmatpush1.msra.mxu0 0.0
    %257 = vmatprep.subr.mxu0 0.0
    %258 = vmatpush1.msra.mxu0 0.0
    %259 = vmatprep.subr.mxu0 0.0
    %260 = vmatpush1.msra.mxu0 0.0
    %261 = vmatprep.subr.mxu0 0.0
    %262 = vmatpush1.msra.mxu0 0.0
    %263 = vmatprep.subr.mxu0 0.0
    %264 = vmatpush1.msra.mxu0 0.0
    %265 = vmatprep.subr.mxu0 0.0
    %266 = vmatpush1.msra.mxu0 0.0
    %267 = vmatprep.subr.mxu0 0.0
    %268 = vmatpush1.msra.mxu0 0.0
    %269 = vmatprep.subr.mxu0 0.0
    %270 = vmatpush1.msra.mxu0 0.0
    %271 = vmatprep.subr.mxu0 0.0
    %272 = vmatpush1.msra.mxu0 0.0
    %273 = vmatprep.subr.mxu0 0.0
    %274 = vmatpush1.msra.mxu0 0.0
    %275 = vmatprep.subr.mxu0 0.0
    %276 = vmatpush1.msra.mxu0 0.0
    %277 = vmatprep.subr.mxu0 0.0
    %278 = vmatpush1.msra.mxu0 0.0
    %279 = vmatprep.mubr.f32.mxu0 0.0
    %280 = vmatmul.mubr.f32.gmra.mrb[0].mxu0 %v213
    %v281 = vpop.f32.mrb[0].mxu0
    %v282 = vadd.f32 %v209, %v281
    %v283 = vpop.f32.mrb[0].mxu0
    %284 = vdwg.mxu0
    %v285 = vxor.u32 %v282, 2147483648
    %v286 = vmul.f32 %v285, 1.442695
    %v287 = vpow.pop %v286
    %v288 = vadd.f32 %v287, 1.0
    %v289 = vrcp.pop %v288
    %v290 = vmul.f32 1.0, %v289
    %292 = vrot.lane.b32.xlu0 %v282, 32
    %v293 = vpop.permute.xlu0 %292
    %v295 = vmul.f32 %v290, %v293
    %297 = vrot.lane.b32.xlu0 %v295, 64
    %v298 = vpop.permute.xlu0 %297
    %v300 = vadd.f32 %v282, %v298
    %v301 = vtanh.pop %v300
    %303 = vrot.lane.b32.xlu0 %v301, 64
    %v304 = vpop.permute.xlu0 %303
    %v306 = vsub.f32 %v189, %v304
    %308 = vrot.lane.b32.xlu0 %v306, 32
    %v309 = vpop.permute.xlu0 %308
    %v311 = vmul.f32 %v290, %v309
    %313 = vrot.lane.b32.xlu0 %v311, 32
    %v314 = vpop.permute.xlu0 %313
    %v316 = vadd.f32 %v301, %v314
    %318 = vrot.lane.b32.xlu0 %v316, 64
    %v319 = vpop.permute.xlu0 %318
    %321 = vst.msk [vmem:[#allocation2] sm:$0xff] %vm194, %v319
    %322 = vst.msk [vmem:[#allocation13] sm:$0xff] %vm194, %v319
    %v323 = vld [vmem:[#allocation11] sm:$0xff]
    %v324 = vld [vmem:[#allocation11 + $0x8] sm:$0xff]
    %v325 = vld [vmem:[#allocation11 + $0x10] sm:$0xff]
    %v326 = vld [vmem:[#allocation11 + $0x18] sm:$0xff]
    %v327 = vld [vmem:[%s7] sm:$0x1]
    %v329 = vlaneseq
    %v330 = vshrl.u32 %v329, 7
    %v331 = vsub.s32 0, %v330
    %v332 = vrot.slane %v327, %v331
    %v334 = vsel %vm194, %v319, 0
    %336 = vmatprep.subr.mxu0 0.0
    %337 = vmatpush1.msra.mxu0 %v323
    %338 = vmatprep.subr.mxu0 0.0
    %339 = vmatpush1.msra.mxu0 %v324
    %340 = vmatprep.subr.mxu0 0.0
    %341 = vmatpush1.msra.mxu0 %v325
    %342 = vmatprep.subr.mxu0 0.0
    %343 = vmatpush1.msra.mxu0 %v326
    %344 = vmatprep.subr.mxu0 0.0
    %345 = vmatpush1.msra.mxu0 0.0
    %346 = vmatprep.subr.mxu0 0.0
    %347 = vmatpush1.msra.mxu0 0.0
    %348 = vmatprep.subr.mxu0 0.0
    %349 = vmatpush1.msra.mxu0 0.0
    %350 = vmatprep.subr.mxu0 0.0
    %351 = vmatpush1.msra.mxu0 0.0
    %352 = vmatprep.subr.mxu0 0.0
    %353 = vmatpush1.msra.mxu0 0.0
    %354 = vmatprep.subr.mxu0 0.0
    %355 = vmatpush1.msra.mxu0 0.0
    %356 = vmatprep.subr.mxu0 0.0
    %357 = vmatpush1.msra.mxu0 0.0
    %358 = vmatprep.subr.mxu0 0.0
    %359 = vmatpush1.msra.mxu0 0.0
    %360 = vmatprep.subr.mxu0 0.0
    %361 = vmatpush1.msra.mxu0 0.0
    %362 = vmatprep.subr.mxu0 0.0
    %363 = vmatpush1.msra.mxu0 0.0
    %364 = vmatprep.subr.mxu0 0.0
    %365 = vmatpush1.msra.mxu0 0.0
    %366 = vmatprep.subr.mxu0 0.0
    %367 = vmatpush1.msra.mxu0 0.0
    %368 = vmatprep.subr.mxu0 0.0
    %369 = vmatpush1.msra.mxu0 0.0
    %370 = vmatprep.subr.mxu0 0.0
    %371 = vmatpush1.msra.mxu0 0.0
    %372 = vmatprep.subr.mxu0 0.0
    %373 = vmatpush1.msra.mxu0 0.0
    %374 = vmatprep.subr.mxu0 0.0
    %375 = vmatpush1.msra.mxu0 0.0
    %376 = vmatprep.subr.mxu0 0.0
    %377 = vmatpush1.msra.mxu0 0.0
    %378 = vmatprep.subr.mxu0 0.0
    %379 = vmatpush1.msra.mxu0 0.0
    %380 = vmatprep.subr.mxu0 0.0
    %381 = vmatpush1.msra.mxu0 0.0
    %382 = vmatprep.subr.mxu0 0.0
    %383 = vmatpush1.msra.mxu0 0.0
    %384 = vmatprep.subr.mxu0 0.0
    %385 = vmatpush1.msra.mxu0 0.0
    %386 = vmatprep.subr.mxu0 0.0
    %387 = vmatpush1.msra.mxu0 0.0
    %388 = vmatprep.subr.mxu0 0.0
    %389 = vmatpush1.msra.mxu0 0.0
    %390 = vmatprep.subr.mxu0 0.0
    %391 = vmatpush1.msra.mxu0 0.0
    %392 = vmatprep.subr.mxu0 0.0
    %393 = vmatpush1.msra.mxu0 0.0
    %394 = vmatprep.subr.mxu0 0.0
    %395 = vmatpush1.msra.mxu0 0.0
    %396 = vmatprep.subr.mxu0 0.0
    %397 = vmatpush1.msra.mxu0 0.0
    %398 = vmatprep.subr.mxu0 0.0
    %399 = vmatpush1.msra.mxu0 0.0
    %400 = vmatprep.mubr.f32.mxu0 0.0
    %401 = vmatmul.mubr.f32.gmra.mrb[0].mxu0 %v334
    %v402 = vpop.f32.mrb[0].mxu0
    %v403 = vadd.f32 %v332, %v402
    %v404 = vpop.f32.mrb[0].mxu0
    %405 = vdwg.mxu0
    %406 = vst [vmem:[#allocation12] sm:$0xff] %v403
    // Predicated region
    $region58: #{tpu_custom_call.1} parent=1 // pred_check
      _
    $region59: #{tpu_custom_call.1} parent=1 // pred_check_branch
      %408 = sbr.rel (0) target = $region61
    $region60: #{tpu_custom_call.1} parent=1 // pred_region
      %s410 = ssub.s32 128, 128
      %411 = vsyncadd [#allocation5], %s410
      %s413 = sshll.u32 [#allocation12], 4
      %s414 = int_to_ptr.vmem [resolvable:$true] %s413
      %416 = dma.vmem_to_hbm [thread:$0]  %s414, 128, %s8, [#allocation5]
    $region61: #{tpu_custom_call.1} parent=1 // pred_fallthru
      _
    // Predicated region
    $region62: #{tpu_custom_call.1} parent=1 // pred_check
      _
    $region63: #{tpu_custom_call.1} parent=1 // pred_check_branch
      %418 = sbr.rel (0) target = $region65
    $region64: #{tpu_custom_call.1} parent=1 // pred_region
      %s420 = ssub.s32 128, 128
      %421 = vsyncadd [#allocation14], %s420
      %s423 = sshll.u32 [#allocation13], 4
      %s424 = int_to_ptr.vmem [resolvable:$true] %s423
      %426 = dma.vmem_to_hbm [thread:$0]  %s424, 128, %s9, [#allocation14]
    $region65: #{tpu_custom_call.1} parent=1 // pred_fallthru
      _
    // Predicated region
    $region66: #{tpu_custom_call.1} parent=1 // pred_check
      _
    $region67: #{tpu_custom_call.1} parent=1 // pred_check_branch
      %428 = sbr.rel (0) target = $region69
    $region68: #{tpu_custom_call.1} parent=1 // pred_region
      %429 = dma.done [#allocation5], 128
    $region69: #{tpu_custom_call.1} parent=1 // pred_fallthru
      _
    // Predicated region
    $region70: #{tpu_custom_call.1} parent=1 // pred_check
      _
    $region71: #{tpu_custom_call.1} parent=1 // pred_check_branch
      %431 = sbr.rel (0) target = $region73
    $region72: #{tpu_custom_call.1} parent=1 // pred_region
      %432 = dma.done [#allocation14], 128
    $region73: #{tpu_custom_call.1} parent=1 // pred_fallthru
      _
    %433 = vsyncpa [#allocation4], 1
    %434 = vsyncpa [#allocation7], 1
    %435 = vsyncpa [#allocation10], 1
    %436 = vsyncpa [#allocation5], 1
    %437 = vsyncpa [#allocation14], 1

</llo_original>
